<compile_context>
chip_gen: v7x
topology: tpu7x:2x2x1
jax: 0.10.0
libtpu: 0.0.40
codegen_flags: <defaults>
</compile_context>

<pallas_src>
import functools

import jax
import jax.numpy as jnp
from jax.experimental import pallas as pl
from jax.experimental.pallas import tpu as pltpu


def _round_up(v, m):
    return ((v + m - 1) // m) * m


@functools.lru_cache(maxsize=1)
def _chip_budget():
    """Returns (target input-tile bytes, scoped-VMEM cap bytes) per TPU gen."""
    vmem = None
    try:
        info = pltpu.get_tpu_info()
        vmem = int(getattr(info, "vmem_capacity_bytes", 0)) or None
    except Exception:
        vmem = None
    if vmem is not None and vmem <= 80 * 1024 * 1024:
        # v7x-class: 64 MiB physical VMEM per TensorCore, ~3.2 TB/s HBM.
        # Bigger tiles amortize the ~0.35 us/step grid overhead.
        return 12 * 1024 * 1024, 48 * 1024 * 1024
    # v5e / v6e: 128 MiB physical VMEM; ~8 MiB tiles are past the measured
    # mem-bound plateau.
    return 8 * 1024 * 1024, 96 * 1024 * 1024


def _fm_kernel_reduce(x_ref, o_ref, *, num_fields, embed_dim):
    # x_ref: (tb, F*D) lane-dense block in VMEM; output (tb, 1).
    # Single pass: field sum and sum-of-squares folded into one unrolled loop,
    # promoting each D-wide slice to f32 (no full-tile f32 temp).
    x0 = x_ref[:, 0:embed_dim].astype(jnp.float32)
    s = x0
    ss = x0 * x0
    for f in range(1, num_fields):
        xf = x_ref[:, f * embed_dim:(f + 1) * embed_dim].astype(jnp.float32)
        s = s + xf
        ss = ss + xf * xf
    ix = s * s - ss                                        # (tb, D)
    o_ref[...] = (0.5 * jnp.sum(ix, axis=-1, keepdims=True)).astype(o_ref.dtype)


def _fm_kernel_noreduce(x_ref, o_ref, *, num_fields, embed_dim):
    # x_ref: (tb, F*D) lane-dense block in VMEM; output (tb, D).
    x0 = x_ref[:, 0:embed_dim].astype(jnp.float32)
    s = x0
    ss = x0 * x0
    for f in range(1, num_fields):
        xf = x_ref[:, f * embed_dim:(f + 1) * embed_dim].astype(jnp.float32)
        s = s + xf
        ss = ss + xf * xf
    o_ref[...] = (0.5 * (s * s - ss)).astype(o_ref.dtype)


@functools.partial(jax.jit, static_argnames=("reduce_sum", "block_b"))
def factorization_machine(x, reduce_sum=True, block_b=None):
    """x: (batch, num_fields, embed_dim) float array (f32 or bf16)."""
    B, F, D = x.shape
    FD = F * D
    itemsize = jnp.dtype(x.dtype).itemsize
    target_bytes, vmem_cap = _chip_budget()

    # VMEM footprint per row includes the lane-padded output block: a
    # (block_b, 1) output occupies block_b * 128 lanes; (block_b, D) pads D
    # up to a multiple of 128.
    padded_out_cols = 128 if reduce_sum else _round_up(D, 128)
    per_row_bytes = (FD + padded_out_cols) * itemsize

    if block_b is None:
        total_in_bytes = B * FD * itemsize
        if total_in_bytes <= 2 * target_bytes:
            # Small problem: aim for >=2 grid steps so both v7x TensorCores
            # get work and the prologue DMA can pipeline.
            block_b = _round_up(pl.cdiv(B, 2), 8)
        else:
            block_b = _round_up(max(8, target_bytes // per_row_bytes), 8)
    block_b = max(8, _round_up(block_b, 8))
    # Never use a tile taller than the (sublane-rounded) batch itself.
    block_b = min(block_b, _round_up(B, 8))

    # Ragged last block is handled by Pallas: the computation is strictly
    # per-row, so undefined rows in the last input tile only feed output rows
    # whose writes are masked. No jnp.pad, no extra HBM copy.
    grid = (pl.cdiv(B, block_b),)

    in_tile_bytes = block_b * FD * itemsize
    out_tile_bytes = block_b * padded_out_cols * itemsize
    vmem_limit = min(
        vmem_cap,
        max(16 * 1024 * 1024,
            2 * (in_tile_bytes + out_tile_bytes) + 4 * 1024 * 1024))

    # Lane-dense layout: (B, F*D). Free reshape for a contiguous array.
    x2d = x.reshape(B, FD)

    in_specs = [pl.BlockSpec((block_b, FD), lambda b: (b, 0))]
    if reduce_sum:
        out_shape = jax.ShapeDtypeStruct((B, 1), x.dtype)
        out_specs = pl.BlockSpec((block_b, 1), lambda b: (b, 0))
        kernel = functools.partial(_fm_kernel_reduce, num_fields=F, embed_dim=D)
    else:
        out_shape = jax.ShapeDtypeStruct((B, D), x.dtype)
        out_specs = pl.BlockSpec((block_b, D), lambda b: (b, 0))
        kernel = functools.partial(_fm_kernel_noreduce, num_fields=F, embed_dim=D)

    return pl.pallas_call(
        kernel,
        out_shape=out_shape,
        grid=grid,
        in_specs=in_specs,
        out_specs=out_specs,
        compiler_params=pltpu.CompilerParams(
            dimension_semantics=("parallel",),
            vmem_limit_bytes=int(vmem_limit),
        ),
    )(x2d)


def _fm_reference(x, reduce_sum=True):
    square_of_sum = jnp.sum(x, axis=1) ** 2
    sum_of_square = jnp.sum(x ** 2, axis=1)
    ix = square_of_sum - sum_of_square
    if reduce_sum:
        ix = jnp.sum(ix, axis=1, keepdims=True)
    return 0.5 * ix


if __name__ == "__main__":
    key = jax.random.PRNGKey(0)
    # (batch_size, num_fields, embed_dim) — small demo shapes.
    B, F, D = 8, 8, 32
    x = jax.random.normal(key, (B, F, D), dtype=jnp.float32)

    out = jax.block_until_ready(factorization_machine(x, reduce_sum=True))
    ref = _fm_reference(x, reduce_sum=True)
    assert out.shape == (B, 1), out.shape
    assert jnp.allclose(out, ref, atol=1e-4, rtol=1e-4), "mismatch vs reference"

    # non-reduced variant
    out_nr = jax.block_until_ready(factorization_machine(x, reduce_sum=False))
    ref_nr = _fm_reference(x, reduce_sum=False)
    assert out_nr.shape == (B, D), out_nr.shape
    assert jnp.allclose(out_nr, ref_nr, atol=1e-4, rtol=1e-4), "mismatch (no reduce)"

    # odd batch size (exercises the ragged-last-block path, no padding copy)
    B2 = 10
    x2 = jax.random.normal(jax.random.PRNGKey(1), (B2, F, D), dtype=jnp.float32)
    out2 = jax.block_until_ready(factorization_machine(x2, reduce_sum=True))
    ref2 = _fm_reference(x2, reduce_sum=True)
    assert out2.shape == (B2, 1), out2.shape
    assert jnp.allclose(out2, ref2, atol=1e-4, rtol=1e-4), "mismatch (odd batch)"

    # bf16 input (f32 accumulation in-kernel, cast back to bf16)
    x3 = x.astype(jnp.bfloat16)
    out3 = jax.block_until_ready(factorization_machine(x3, reduce_sum=True))
    ref3 = _fm_reference(x3.astype(jnp.float32), reduce_sum=True)
    assert jnp.allclose(out3.astype(jnp.float32), ref3, atol=1e-1, rtol=1e-2), \
        "mismatch (bf16)"

    print("KERNEL_OK")
</pallas_src>

<mosaic_0001>
module attributes {stable_mosaic.version = 11 : i64} {
  func.func @_fm_kernel_reduce(%arg0: i32, %arg1: memref<8x256xf32, #tpu.memory_space<vmem>>, %arg2: memref<8x1xf32, #tpu.memory_space<vmem>>) attributes {dimension_semantics = [#tpu.dimension_semantics<parallel>], iteration_bounds = array<i64: 1>, scalar_prefetch = 0 : i64, scratch_operands = 0 : i64, tpu.core_type = #tpu.core_type<tc>, window_params = [{transform_indices = @transform_0, window_bounds = array<i64: 8, 256>}, {transform_indices = @transform_1, window_bounds = array<i64: 8, 1>}]} {
    %c0 = arith.constant 0 : index
    %c0_0 = arith.constant 0 : index
    %0 = vector.load %arg1[%c0, %c0_0] : memref<8x256xf32, #tpu.memory_space<vmem>>, vector<8x32xf32>
    %1 = arith.mulf %0, %0 : vector<8x32xf32>
    %c0_1 = arith.constant 0 : index
    %c32 = arith.constant 32 : index
    %2 = vector.load %arg1[%c0_1, %c32] : memref<8x256xf32, #tpu.memory_space<vmem>>, vector<8x32xf32>
    %3 = arith.addf %0, %2 : vector<8x32xf32>
    %4 = arith.mulf %2, %2 : vector<8x32xf32>
    %5 = arith.addf %1, %4 : vector<8x32xf32>
    %c0_2 = arith.constant 0 : index
    %c64 = arith.constant 64 : index
    %6 = vector.load %arg1[%c0_2, %c64] : memref<8x256xf32, #tpu.memory_space<vmem>>, vector<8x32xf32>
    %7 = arith.addf %3, %6 : vector<8x32xf32>
    %8 = arith.mulf %6, %6 : vector<8x32xf32>
    %9 = arith.addf %5, %8 : vector<8x32xf32>
    %c0_3 = arith.constant 0 : index
    %c96 = arith.constant 96 : index
    %10 = vector.load %arg1[%c0_3, %c96] : memref<8x256xf32, #tpu.memory_space<vmem>>, vector<8x32xf32>
    %11 = arith.addf %7, %10 : vector<8x32xf32>
    %12 = arith.mulf %10, %10 : vector<8x32xf32>
    %13 = arith.addf %9, %12 : vector<8x32xf32>
    %c0_4 = arith.constant 0 : index
    %c128 = arith.constant 128 : index
    %14 = vector.load %arg1[%c0_4, %c128] : memref<8x256xf32, #tpu.memory_space<vmem>>, vector<8x32xf32>
    %15 = arith.addf %11, %14 : vector<8x32xf32>
    %16 = arith.mulf %14, %14 : vector<8x32xf32>
    %17 = arith.addf %13, %16 : vector<8x32xf32>
    %c0_5 = arith.constant 0 : index
    %c160 = arith.constant 160 : index
    %18 = vector.load %arg1[%c0_5, %c160] : memref<8x256xf32, #tpu.memory_space<vmem>>, vector<8x32xf32>
    %19 = arith.addf %15, %18 : vector<8x32xf32>
    %20 = arith.mulf %18, %18 : vector<8x32xf32>
    %21 = arith.addf %17, %20 : vector<8x32xf32>
    %c0_6 = arith.constant 0 : index
    %c192 = arith.constant 192 : index
    %22 = vector.load %arg1[%c0_6, %c192] : memref<8x256xf32, #tpu.memory_space<vmem>>, vector<8x32xf32>
    %23 = arith.addf %19, %22 : vector<8x32xf32>
    %24 = arith.mulf %22, %22 : vector<8x32xf32>
    %25 = arith.addf %21, %24 : vector<8x32xf32>
    %c0_7 = arith.constant 0 : index
    %c224 = arith.constant 224 : index
    %26 = vector.load %arg1[%c0_7, %c224] : memref<8x256xf32, #tpu.memory_space<vmem>>, vector<8x32xf32>
    %27 = arith.addf %23, %26 : vector<8x32xf32>
    %28 = arith.mulf %26, %26 : vector<8x32xf32>
    %29 = arith.addf %25, %28 : vector<8x32xf32>
    %30 = arith.mulf %27, %27 : vector<8x32xf32>
    %31 = arith.subf %30, %29 : vector<8x32xf32>
    %cst = arith.constant dense<0.000000e+00> : vector<8xf32>
    %32 = vector.multi_reduction <add>, %31, %cst [1] : vector<8x32xf32> to vector<8xf32>
    %33 = vector.shape_cast %32 : vector<8xf32> to vector<8x1xf32>
    %cst_8 = arith.constant 5.000000e-01 : f32
    %34 = vector.broadcast %cst_8 : f32 to vector<8x1xf32>
    %35 = arith.mulf %34, %33 : vector<8x1xf32>
    %c0_9 = arith.constant 0 : index
    %c0_10 = arith.constant 0 : index
    %36 = vector.load %arg2[%c0_9, %c0_10] : memref<8x1xf32, #tpu.memory_space<vmem>>, vector<8x1xf32>
    tpu.vector_store %arg2[%c0_9, %c0_10], %35 {strides = array<i32>} : memref<8x1xf32, #tpu.memory_space<vmem>>, vector<8x1xf32>,
    return
  }
  func.func @transform_0(%arg0: i32) -> (i32, i32) {
    %c0_i32 = arith.constant 0 : i32
    %c0_i32_0 = arith.constant 0 : i32
    return %arg0, %c0_i32 : i32, i32
  }
  func.func @transform_1(%arg0: i32) -> (i32, i32) {
    %c0_i32 = arith.constant 0 : i32
    %c0_i32_0 = arith.constant 0 : i32
    return %arg0, %c0_i32 : i32, i32
  }
}

</mosaic_0001>

<llo_original>
// kernel: factorization_machine.1
$region0: #{factorization_machine.1}
  #allocation0 [shape = 'u32[]', space=smem, size = 0x4, offset = 0x4, fixed_abs, tag = 'smem constant byte address 0x4 - core index']
  #allocation1 [shape = 'u32[144,128]{1,0:T(1,128)}', space=vmem, size = 0x12000, scoped, tag = 'internal scratch']
  %s0 = inlined_call_operand.vmem [shape: f32[8,256], index: 0, kind: input, shape index: {}]
  %s1 = inlined_call_operand.vmem [shape: f32[8,1], index: 1, kind: output, shape index: {}]
  %s2 = sld [smem:[#allocation0]]
  $region14: #{factorization_machine.1} parent=0
    _
  %s4 = ssub.s32 1, %s2
  %s5 = scalar_select 0, %s4, %s2
  // Predicated region
  $region2: #{factorization_machine.1} parent=0 // pred_check
    _
  $region3: #{factorization_machine.1} parent=0 // pred_check_branch
    %7 = sbr.rel (0) target = $region5
  $region4: #{factorization_machine.1} parent=0 // pred_region
    _
  $region5: #{factorization_machine.1} parent=0 // pred_fallthru
    _
  %v8 = vld [vmem:[%s0] sm:$0xff]
  %v9 = vmul.f32 %v8, %v8
  %11 = vrot.lane.b32.xlu0 %v8, 96
  %v12 = vpop.permute.xlu0 %11
  %v14 = vadd.f32 %v8, %v12
  %16 = vrot.lane.b32.xlu0 %v9, 96
  %v17 = vpop.permute.xlu0 %16
  %v19 = vadd.f32 %v9, %v17
  %20 = vrot.lane.b32.xlu0 %v8, 64
  %v21 = vpop.permute.xlu0 %20
  %v23 = vadd.f32 %v14, %v21
  %24 = vrot.lane.b32.xlu0 %v9, 64
  %v25 = vpop.permute.xlu0 %24
  %v27 = vadd.f32 %v19, %v25
  %28 = vrot.lane.b32.xlu0 %v8, 32
  %v29 = vpop.permute.xlu0 %28
  %v31 = vadd.f32 %v23, %v29
  %32 = vrot.lane.b32.xlu0 %v9, 32
  %v33 = vpop.permute.xlu0 %32
  %v35 = vadd.f32 %v27, %v33
  %v36 = vld [vmem:[%s0 + $0x8] sm:$0xff]
  %v37 = vadd.f32 %v31, %v36
  %v38 = vmul.f32 %v36, %v36
  %v39 = vadd.f32 %v35, %v38
  %41 = vrot.lane.b32.xlu0 %v36, 96
  %v42 = vpop.permute.xlu0 %41
  %v44 = vadd.f32 %v37, %v42
  %46 = vrot.lane.b32.xlu0 %v38, 96
  %v47 = vpop.permute.xlu0 %46
  %v49 = vadd.f32 %v39, %v47
  %50 = vrot.lane.b32.xlu0 %v36, 64
  %v51 = vpop.permute.xlu0 %50
  %v53 = vadd.f32 %v44, %v51
  %54 = vrot.lane.b32.xlu0 %v38, 64
  %v55 = vpop.permute.xlu0 %54
  %v57 = vadd.f32 %v49, %v55
  %58 = vrot.lane.b32.xlu0 %v36, 32
  %v59 = vpop.permute.xlu0 %58
  %v61 = vadd.f32 %v53, %v59
  %62 = vrot.lane.b32.xlu0 %v38, 32
  %v63 = vpop.permute.xlu0 %62
  %v65 = vadd.f32 %v57, %v63
  %v66 = vmul.f32 %v61, %v61
  %v67 = vsub.f32 %v66, %v65
  %vm68 = vcmask 261120
  %v69 = vsel %vm68, %v67, 0.0
  %70 = vadd.xlane.f32.xlu0 %v69
  %v71 = vpop.xlane.xlu0 %70
  %v72 = vmul.f32 %v71, 0.5
  %vm73 = vcmask 7168
  %74 = vst.msk [vmem:[%s1] sm:$0xff] %vm73, %v72
  // Predicated region
  $region6: #{factorization_machine.1} parent=0 // pred_check
    _
  $region7: #{factorization_machine.1} parent=0 // pred_check_branch
    %76 = sbr.rel (0) target = $region9
  $region8: #{factorization_machine.1} parent=0 // pred_region
    _
  $region9: #{factorization_machine.1} parent=0 // pred_fallthru
    _
  // Predicated region
  $region10: #{factorization_machine.1} parent=0 // pred_check
    _
  $region11: #{factorization_machine.1} parent=0 // pred_check_branch
    %78 = sbr.rel (0) target = $region13
  $region12: #{factorization_machine.1} parent=0 // pred_region
    _
  $region13: #{factorization_machine.1} parent=0 // pred_fallthru
    _

</llo_original>
